<compile_context>
chip_gen: v7x
topology: tpu7x:2x2x1
jax: 0.10.0
libtpu: 0.0.40
codegen_flags: <defaults>
</compile_context>

<pallas_src>
import jax
import jax.numpy as jnp
from jax.experimental import pallas as pl
from jax.experimental.pallas import tpu as pltpu


def gcn_kernel(adj_ref, mask_ref, x_ref, w_ref, b_ref, o_ref, a_s, inv_s):
    b = pl.program_id(0)

    # Normalized-adjacency ingredients computed once (first batch step),
    # persisted in VMEM scratch and reused for every subsequent batch.
    @pl.when(b == 0)
    def _():
        a = adj_ref[...] * mask_ref[...]                     # (N, N)
        a_s[...] = a
        deg = jnp.sum(a, axis=1, keepdims=True)              # (N, 1)
        # Guard on deg == 0 (robust form of torch's "inv == +inf -> 0" rule).
        # Deviation: deg == -0.0 is also zeroed here (torch would keep -inf);
        # practically unreachable with random data.
        inv_s[...] = jnp.where(deg == 0.0, 0.0, 1.0 / deg)   # exact divide

    # Matmul 1 on the raw masked adjacency; fold the row normalization into
    # the small (N, C_in) result instead of materializing d_a = inv * a.
    s = inv_s[...] * jnp.dot(a_s[...], x_ref[...],
                             preferred_element_type=jnp.float32)    # (N, C_in)

    # Matmul 2: shared FC weight (no block-diagonal kron), + bias, ReLU.
    out = jnp.dot(s, w_ref[...],
                  preferred_element_type=jnp.float32) + b_ref[...]  # (N, C_out)
    o_ref[...] = jnp.maximum(out, 0.0).astype(o_ref.dtype)


def adapt_gcn_forward(x, adj, mask, w_t, bias):
    """x: (B, N, C_in); adj, mask: (N, N); w_t: (C_in, C_out); bias: (1, C_out)."""
    B, N, C_in = x.shape
    C_out = w_t.shape[1]

    flops = B * (2 * N * N * C_in + 2 * N * C_in * C_out)
    bytes_accessed = 4 * (2 * N * N + B * N * C_in + C_in * C_out + C_out
                          + B * N * C_out)

    return pl.pallas_call(
        gcn_kernel,
        out_shape=jax.ShapeDtypeStruct((B, N, C_out), jnp.float32),
        grid=(B,),
        in_specs=[
            pl.BlockSpec((N, N), lambda b: (0, 0)),                       # adj
            pl.BlockSpec((N, N), lambda b: (0, 0)),                       # mask
            pl.BlockSpec((pl.Squeezed(), N, C_in), lambda b: (b, 0, 0)),  # x[b]
            pl.BlockSpec((C_in, C_out), lambda b: (0, 0)),                # W^T (shared)
            pl.BlockSpec((1, C_out), lambda b: (0, 0)),                   # bias
        ],
        out_specs=pl.BlockSpec((pl.Squeezed(), N, C_out), lambda b: (b, 0, 0)),
        scratch_shapes=[
            pltpu.VMEM((N, N), jnp.float32),   # a = adj * mask (computed at b==0)
            pltpu.VMEM((N, 1), jnp.float32),   # inverse degree vector
        ],
        compiler_params=pltpu.CompilerParams(
            # Sequential: steps b > 0 reuse the scratch written at b == 0.
            dimension_semantics=("arbitrary",),
        ),
        cost_estimate=pl.CostEstimate(flops=flops, transcendentals=0,
                                      bytes_accessed=bytes_accessed),
    )(adj, mask, x, w_t, bias)


def reference_forward(x, adj, mask, w_t, bias):
    # Faithful to the PyTorch module.
    a = adj * mask
    deg = jnp.sum(a, axis=1)
    inv = 1.0 / deg
    inv = jnp.where(inv == jnp.inf, 0.0, inv)
    d_a = jnp.diag(inv) @ a
    out_1 = jnp.einsum('nm,bmc->bnc', d_a, x)
    return jnp.maximum(out_1 @ w_t + bias, 0.0)


if __name__ == "__main__":
    key = jax.random.PRNGKey(0)
    k_x, k_adj, k_mask, k_w, k_b = jax.random.split(key, 5)

    B, N, C_in, C_out = 2, 16, 32, 32

    x = jax.random.normal(k_x, (B, N, C_in), dtype=jnp.float32)
    adj = jax.random.uniform(k_adj, (N, N), dtype=jnp.float32)

    # mask: xavier_normal_ with gain=0.0003 -> std = gain * sqrt(2/(N+N))
    mask_std = 0.0003 * jnp.sqrt(2.0 / (N + N))
    mask = mask_std * jax.random.normal(k_mask, (N, N), dtype=jnp.float32)

    # nn.Linear(in_dim, out_dim): weight (out,in) ~ U(-1/sqrt(in), 1/sqrt(in))
    bound = 1.0 / jnp.sqrt(jnp.float32(C_in))
    w = jax.random.uniform(k_w, (C_out, C_in), minval=-bound, maxval=bound,
                           dtype=jnp.float32)
    bias = jax.random.uniform(k_b, (1, C_out), minval=-bound, maxval=bound,
                              dtype=jnp.float32)
    w_t = w.T  # (C_in, C_out)

    out = adapt_gcn_forward(x, adj, mask, w_t, bias)
    out = jax.block_until_ready(out)

    ref = reference_forward(x, adj, mask, w_t, bias)
    assert out.shape == (B, N, C_out)
    assert jnp.allclose(out, ref, atol=1e-5, rtol=1e-5), "mismatch vs reference"

    print("KERNEL_OK")
</pallas_src>

<mosaic_0001>
module attributes {stable_mosaic.version = 11 : i64} {
  func.func @gcn_kernel(%arg0: i32, %arg1: memref<16x16xf32, #tpu.memory_space<vmem>>, %arg2: memref<16x16xf32, #tpu.memory_space<vmem>>, %arg3: memref<1x16x32xf32, #tpu.memory_space<vmem>>, %arg4: memref<32x32xf32, #tpu.memory_space<vmem>>, %arg5: memref<1x32xf32, #tpu.memory_space<vmem>>, %arg6: memref<1x16x32xf32, #tpu.memory_space<vmem>>, %arg7: memref<16x16xf32, #tpu.memory_space<vmem>>, %arg8: memref<16x1xf32, #tpu.memory_space<vmem>>) attributes {dimension_semantics = [#tpu.dimension_semantics<arbitrary>], iteration_bounds = array<i64: 2>, scalar_prefetch = 0 : i64, scratch_operands = 2 : i64, tpu.core_type = #tpu.core_type<tc>, window_params = [{pipeline_mode = #tpu.pipeline_mode<synchronous>, transform_indices = @transform_0, window_bounds = array<i64: 16, 16>}, {pipeline_mode = #tpu.pipeline_mode<synchronous>, transform_indices = @transform_1, window_bounds = array<i64: 16, 16>}, {transform_indices = @transform_2, window_bounds = array<i64: 1, 16, 32>}, {pipeline_mode = #tpu.pipeline_mode<synchronous>, transform_indices = @transform_3, window_bounds = array<i64: 32, 32>}, {pipeline_mode = #tpu.pipeline_mode<synchronous>, transform_indices = @transform_4, window_bounds = array<i64: 1, 32>}, {transform_indices = @transform_5, window_bounds = array<i64: 1, 16, 32>}]} {
    %c0_i32 = arith.constant 0 : i32
    %0 = arith.cmpi eq, %arg0, %c0_i32 : i32
    %1 = arith.extui %0 : i1 to i32
    %c0_i32_0 = arith.constant 0 : i32
    %2 = arith.cmpi ne, %1, %c0_i32_0 : i32
    scf.if %2 {
      %c0_16 = arith.constant 0 : index
      %c0_17 = arith.constant 0 : index
      %20 = vector.load %arg1[%c0_16, %c0_17] : memref<16x16xf32, #tpu.memory_space<vmem>>, vector<16x16xf32>
      %c0_18 = arith.constant 0 : index
      %c0_19 = arith.constant 0 : index
      %21 = vector.load %arg2[%c0_18, %c0_19] : memref<16x16xf32, #tpu.memory_space<vmem>>, vector<16x16xf32>
      %22 = arith.mulf %20, %21 : vector<16x16xf32>
      %c0_20 = arith.constant 0 : index
      %c0_21 = arith.constant 0 : index
      %23 = vector.load %arg7[%c0_20, %c0_21] : memref<16x16xf32, #tpu.memory_space<vmem>>, vector<16x16xf32>
      tpu.vector_store %arg7[%c0_20, %c0_21], %22 {strides = array<i32>} : memref<16x16xf32, #tpu.memory_space<vmem>>, vector<16x16xf32>,
      %cst_22 = arith.constant dense<0.000000e+00> : vector<16xf32>
      %24 = vector.multi_reduction <add>, %22, %cst_22 [1] : vector<16x16xf32> to vector<16xf32>
      %25 = vector.shape_cast %24 : vector<16xf32> to vector<16x1xf32>
      %cst_23 = arith.constant 0.000000e+00 : f32
      %26 = vector.broadcast %cst_23 : f32 to vector<16x1xf32>
      %27 = arith.cmpf oeq, %25, %26 : vector<16x1xf32>
      %cst_24 = arith.constant 1.000000e+00 : f32
      %28 = vector.broadcast %cst_24 : f32 to vector<16x1xf32>
      %29 = arith.divf %28, %25 : vector<16x1xf32>
      %cst_25 = arith.constant 0.000000e+00 : f32
      %30 = vector.broadcast %cst_25 : f32 to vector<16x1xf32>
      %31 = arith.select %27, %30, %29 : vector<16x1xi1>, vector<16x1xf32>
      %c0_26 = arith.constant 0 : index
      %c0_27 = arith.constant 0 : index
      %32 = vector.load %arg8[%c0_26, %c0_27] : memref<16x1xf32, #tpu.memory_space<vmem>>, vector<16x1xf32>
      tpu.vector_store %arg8[%c0_26, %c0_27], %31 {strides = array<i32>} : memref<16x1xf32, #tpu.memory_space<vmem>>, vector<16x1xf32>,
    } else {
    }
    %c0 = arith.constant 0 : index
    %c0_1 = arith.constant 0 : index
    %3 = vector.load %arg8[%c0, %c0_1] : memref<16x1xf32, #tpu.memory_space<vmem>>, vector<16x1xf32>
    %c0_2 = arith.constant 0 : index
    %c0_3 = arith.constant 0 : index
    %4 = vector.load %arg7[%c0_2, %c0_3] : memref<16x16xf32, #tpu.memory_space<vmem>>, vector<16x16xf32>
    %c0_4 = arith.constant 0 : index
    %c0_5 = arith.constant 0 : index
    %c0_6 = arith.constant 0 : index
    %5 = vector.load %arg3[%c0_4, %c0_5, %c0_6] : memref<1x16x32xf32, #tpu.memory_space<vmem>>, vector<1x16x32xf32>
    %6 = vector.shape_cast %5 : vector<1x16x32xf32> to vector<16x32xf32>
    %cst = arith.constant dense<0.000000e+00> : vector<16x32xf32>
    %7 = tpu.matmul %4, %6, %cst {dimension_numbers = #tpu.dot_dimension_numbers<[1], [0], [0], [1], [0, 0, 1, 1], [], []>} : vector<16x16xf32>, vector<16x32xf32>, vector<16x32xf32> -> vector<16x32xf32>
    %8 = vector.broadcast %3 : vector<16x1xf32> to vector<16x32xf32>
    %9 = arith.mulf %8, %7 : vector<16x32xf32>
    %c0_7 = arith.constant 0 : index
    %c0_8 = arith.constant 0 : index
    %10 = vector.load %arg4[%c0_7, %c0_8] : memref<32x32xf32, #tpu.memory_space<vmem>>, vector<32x32xf32>
    %cst_9 = arith.constant dense<0.000000e+00> : vector<16x32xf32>
    %11 = tpu.matmul %9, %10, %cst_9 {dimension_numbers = #tpu.dot_dimension_numbers<[1], [0], [0], [1], [0, 0, 1, 1], [], []>} : vector<16x32xf32>, vector<32x32xf32>, vector<16x32xf32> -> vector<16x32xf32>
    %c0_10 = arith.constant 0 : index
    %c0_11 = arith.constant 0 : index
    %12 = vector.load %arg5[%c0_10, %c0_11] : memref<1x32xf32, #tpu.memory_space<vmem>>, vector<1x32xf32>
    %13 = vector.broadcast %12 : vector<1x32xf32> to vector<16x32xf32>
    %14 = arith.addf %11, %13 : vector<16x32xf32>
    %cst_12 = arith.constant 0.000000e+00 : f32
    %15 = vector.broadcast %cst_12 : f32 to vector<16x32xf32>
    %16 = arith.maximumf %14, %15 : vector<16x32xf32>
    %c0_13 = arith.constant 0 : index
    %c0_14 = arith.constant 0 : index
    %c0_15 = arith.constant 0 : index
    %17 = vector.load %arg6[%c0_13, %c0_14, %c0_15] : memref<1x16x32xf32, #tpu.memory_space<vmem>>, vector<1x16x32xf32>
    %18 = vector.shape_cast %17 : vector<1x16x32xf32> to vector<16x32xf32>
    %19 = vector.shape_cast %16 : vector<16x32xf32> to vector<1x16x32xf32>
    tpu.vector_store %arg6[%c0_13, %c0_14, %c0_15], %19 {strides = array<i32>} : memref<1x16x32xf32, #tpu.memory_space<vmem>>, vector<1x16x32xf32>,
    return
  }
  func.func @transform_0(%arg0: i32) -> (i32, i32) {
    %c0_i32 = arith.constant 0 : i32
    %c0_i32_0 = arith.constant 0 : i32
    %c0_i32_1 = arith.constant 0 : i32
    return %c0_i32, %c0_i32_0 : i32, i32
  }
  func.func @transform_1(%arg0: i32) -> (i32, i32) {
    %c0_i32 = arith.constant 0 : i32
    %c0_i32_0 = arith.constant 0 : i32
    %c0_i32_1 = arith.constant 0 : i32
    return %c0_i32, %c0_i32_0 : i32, i32
  }
  func.func @transform_2(%arg0: i32) -> (i32, i32, i32) {
    %c0_i32 = arith.constant 0 : i32
    %c0_i32_0 = arith.constant 0 : i32
    %c0_i32_1 = arith.constant 0 : i32
    return %arg0, %c0_i32, %c0_i32_0 : i32, i32, i32
  }
  func.func @transform_3(%arg0: i32) -> (i32, i32) {
    %c0_i32 = arith.constant 0 : i32
    %c0_i32_0 = arith.constant 0 : i32
    %c0_i32_1 = arith.constant 0 : i32
    return %c0_i32, %c0_i32_0 : i32, i32
  }
  func.func @transform_4(%arg0: i32) -> (i32, i32) {
    %c0_i32 = arith.constant 0 : i32
    %c0_i32_0 = arith.constant 0 : i32
    %c0_i32_1 = arith.constant 0 : i32
    return %c0_i32, %c0_i32_0 : i32, i32
  }
  func.func @transform_5(%arg0: i32) -> (i32, i32, i32) {
    %c0_i32 = arith.constant 0 : i32
    %c0_i32_0 = arith.constant 0 : i32
    %c0_i32_1 = arith.constant 0 : i32
    return %arg0, %c0_i32, %c0_i32_0 : i32, i32, i32
  }
}

</mosaic_0001>

<llo_original>
// kernel: tpu_custom_call.1
$region0: #{tpu_custom_call.1}
  #allocation0 [shape = 'u32[]', space=smem, size = 0x4, offset = 0x4, fixed_abs, tag = 'smem constant byte address 0x4 - core index']
  #allocation1 [shape = 'u32[144,128]{1,0:T(1,128)}', space=vmem, size = 0x12000, scoped, tag = 'internal scratch']
  #allocation2 [shape = 'f32[16,16]{1,0:T(8,128)}', space=vmem, size = 0x2000, scoped, tag = 'scratch operand']
  #allocation3 [shape = 'f32[16,1]{1,0:T(8,128)}', space=vmem, size = 0x2000, scoped, tag = 'scratch operand']
  %s0 = inlined_call_operand.hbm [shape: f32[16,16], index: 0, kind: input, shape index: {}]
  %s1 = inlined_call_operand.hbm [shape: f32[16,16], index: 1, kind: input, shape index: {}]
  %s2 = inlined_call_operand.hbm [shape: f32[2,16,32], index: 2, kind: input, shape index: {}]
  %s3 = inlined_call_operand.hbm [shape: f32[32,32], index: 3, kind: input, shape index: {}]
  %s4 = inlined_call_operand.vmem [shape: f32[1,32], index: 4, kind: input, shape index: {}]
  %s5 = inlined_call_operand.hbm [shape: f32[2,16,32], index: 5, kind: output, shape index: {}]
  %s6 = sld [smem:[#allocation0]]
  $region73: #{tpu_custom_call.1} parent=0
    _
  %s8 = ssub.s32 1, %s6
  %s9 = scalar_select 0, %s8, %s6
  $region1: #{tpu_custom_call.1} parent=0
    #allocation4 [shape = 'u8[8192]{0}', space=vmem, size = 0x2000, scoped, tag = 'input window, operand 0, single buffered']
    #allocation5 [shape = 's32[2]{0}', space=sflag, size = 0x8, scoped, tag = 'scoped memory for tpu_custom_call.1']
    #allocation6 [shape = 's32[2]{0}', space=sflag, size = 0x8, scoped, tag = 'scoped memory for tpu_custom_call.1']
    #allocation7 [shape = 'u8[8192]{0}', space=vmem, size = 0x2000, scoped, tag = 'input window, operand 1, single buffered']
    #allocation8 [shape = 's32[1]{0}', space=sflag, size = 0x4, scoped, tag = 'scoped memory for tpu_custom_call.1']
    #allocation9 [shape = 'u8[16384]{0}', space=vmem, size = 0x4000, scoped, tag = 'input window, operand 2']
    #allocation10 [shape = 'u8[16384]{0}', space=vmem, size = 0x4000, scoped, tag = 'input window, operand 3, single buffered']
    #allocation11 [shape = 'u8[16384]{0}', space=vmem, size = 0x4000, scoped, tag = 'output window, operand 0']
    %10 = vsyncpa [#allocation5], 0
    %11 = vsyncpa [#allocation8], 0
    %12 = vsyncpa [#allocation6], 0
    %s13 = scalar_lea.sflag [#allocation6], 1
    %14 = vsyncpa %s13, 0
    loop: start=0, step=1, limit=4
    $region2: #{tpu_custom_call.1} parent=1 // loop_pre_header
      _
    $region3: #{tpu_custom_call.1} parent=1 // loop_header
      %s16 = sphi 0, %s20
      %p17 = scmp.ge.s32.totalorder %s16, 4
      %s24 = sphi 0, %s24
      %s26 = sphi 0, %s24
      %s27 = sphi 0, %s26
      %s41 = sphi 0, %s27
      %s45 = sphi 0, %s45
      %s47 = sphi 0, %s45
      %s48 = sphi 0, %s47
      %s62 = sphi 0, %s48
      %s68 = sphi 0, %s70
      %s71 = sphi 0, %s68
      %s72 = sphi 0, %s71
      %s88 = sphi 0, %s72
      %s92 = sphi 0, %s92
      %s94 = sphi 0, %s92
      %s95 = sphi 0, %s94
      %s109 = sphi 0, %s95
      %s113 = sphi 0, %s113
      %s115 = sphi 0, %s113
      %s116 = sphi 0, %s115
      %s130 = sphi 0, %s116
      %s136 = sphi 0, %s138
      %s139 = sphi 0, %s136
      %s140 = sphi 0, %s139
      %s156 = sphi 0, %s140
    $region4: #{tpu_custom_call.1} parent=1 // loop_header_branch
      %19 = sbr.rel (%p17) target = $region8
    $region5: #{tpu_custom_call.1} parent=1 // loop_body
      %s21 = ssub.s32 %s16, 1
      %s22 = ssub.s32 %s16, 2
      %s23 = sadd.s32 %s16, 1
      %s25 = sadd.s32 %s24, 1
      %p28 = scmp.eq.s32.totalorder %s16, 1
      %p29 = scmp.ne.s32.totalorder %s24, %s26
      %p30 = scmp.eq.s32.totalorder %s16, 0
      %p31 = por %p29, %p30
      %p32 = scmp.ne.s32.totalorder %s24, %s26
      %p33 = scmp.eq.s32.totalorder %s21, 1
      %p34 = por %p32, %p33
      %p35 = scmp.ne.s32.totalorder %s26, %s27
      %p36 = scmp.eq.s32.totalorder %s21, 0
      %p37 = por %p35, %p36
      %p38 = scmp.ne.s32.totalorder %s26, %s27
      %p39 = scmp.eq.s32.totalorder %s22, 1
      %p40 = por %p38, %p39
      %p42 = scmp.ne.s32.totalorder %s27, %s41
      %p43 = scmp.eq.s32.totalorder %s22, 0
      %p44 = por %p42, %p43
      %s46 = sadd.s32 %s45, 1
      %p49 = scmp.eq.s32.totalorder %s16, 1
      %p50 = scmp.ne.s32.totalorder %s45, %s47
      %p51 = scmp.eq.s32.totalorder %s16, 0
      %p52 = por %p50, %p51
      %p53 = scmp.ne.s32.totalorder %s45, %s47
      %p54 = scmp.eq.s32.totalorder %s21, 1
      %p55 = por %p53, %p54
      %p56 = scmp.ne.s32.totalorder %s47, %s48
      %p57 = scmp.eq.s32.totalorder %s21, 0
      %p58 = por %p56, %p57
      %p59 = scmp.ne.s32.totalorder %s47, %s48
      %p60 = scmp.eq.s32.totalorder %s22, 1
      %p61 = por %p59, %p60
      %p63 = scmp.ne.s32.totalorder %s48, %s62
      %p64 = scmp.eq.s32.totalorder %s22, 0
      %p65 = por %p63, %p64
      %s66 = ssub.s32 %s16, %s23
      %p67 = scmp.eq.s32.totalorder %s66, 0
      %s69 = sadd.s32 %s68, 1
      %s70 = scalar_select %p67, %s68, %s69
      %p73 = pneg %p67
      %p74 = scmp.eq.s32.totalorder %s16, 1
      %p75 = por %p73, %p74
      %p76 = scmp.ne.s32.totalorder %s68, %s71
      %p77 = scmp.eq.s32.totalorder %s16, 0
      %p78 = por %p76, %p77
      %p79 = scmp.ne.s32.totalorder %s68, %s71
      %p80 = scmp.eq.s32.totalorder %s21, 1
      %p81 = por %p79, %p80
      %p82 = scmp.ne.s32.totalorder %s71, %s72
      %p83 = scmp.eq.s32.totalorder %s21, 0
      %p84 = por %p82, %p83
      %p85 = scmp.ne.s32.totalorder %s71, %s72
      %p86 = scmp.eq.s32.totalorder %s22, 1
      %p87 = por %p85, %p86
      %p89 = scmp.ne.s32.totalorder %s72, %s88
      %p90 = scmp.eq.s32.totalorder %s22, 0
      %p91 = por %p89, %p90
      %s93 = sadd.s32 %s92, 1
      %p96 = scmp.eq.s32.totalorder %s16, 1
      %p97 = scmp.ne.s32.totalorder %s92, %s94
      %p98 = scmp.eq.s32.totalorder %s16, 0
      %p99 = por %p97, %p98
      %p100 = scmp.ne.s32.totalorder %s92, %s94
      %p101 = scmp.eq.s32.totalorder %s21, 1
      %p102 = por %p100, %p101
      %p103 = scmp.ne.s32.totalorder %s94, %s95
      %p104 = scmp.eq.s32.totalorder %s21, 0
      %p105 = por %p103, %p104
      %p106 = scmp.ne.s32.totalorder %s94, %s95
      %p107 = scmp.eq.s32.totalorder %s22, 1
      %p108 = por %p106, %p107
      %p110 = scmp.ne.s32.totalorder %s95, %s109
      %p111 = scmp.eq.s32.totalorder %s22, 0
      %p112 = por %p110, %p111
      %s114 = sadd.s32 %s113, 1
      %p117 = scmp.eq.s32.totalorder %s16, 1
      %p118 = scmp.ne.s32.totalorder %s113, %s115
      %p119 = scmp.eq.s32.totalorder %s16, 0
      %p120 = por %p118, %p119
      %p121 = scmp.ne.s32.totalorder %s113, %s115
      %p122 = scmp.eq.s32.totalorder %s21, 1
      %p123 = por %p121, %p122
      %p124 = scmp.ne.s32.totalorder %s115, %s116
      %p125 = scmp.eq.s32.totalorder %s21, 0
      %p126 = por %p124, %p125
      %p127 = scmp.ne.s32.totalorder %s115, %s116
      %p128 = scmp.eq.s32.totalorder %s22, 1
      %p129 = por %p127, %p128
      %p131 = scmp.ne.s32.totalorder %s116, %s130
      %p132 = scmp.eq.s32.totalorder %s22, 0
      %p133 = por %p131, %p132
      %s134 = ssub.s32 %s16, %s23
      %p135 = scmp.eq.s32.totalorder %s134, 0
      %s137 = sadd.s32 %s136, 1
      %s138 = scalar_select %p135, %s136, %s137
      %p141 = pneg %p135
      %p142 = scmp.eq.s32.totalorder %s16, 1
      %p143 = por %p141, %p142
      %p144 = scmp.ne.s32.totalorder %s136, %s139
      %p145 = scmp.eq.s32.totalorder %s16, 0
      %p146 = por %p144, %p145
      %p147 = scmp.ne.s32.totalorder %s136, %s139
      %p148 = scmp.eq.s32.totalorder %s21, 1
      %p149 = por %p147, %p148
      %p150 = scmp.ne.s32.totalorder %s139, %s140
      %p151 = scmp.eq.s32.totalorder %s21, 0
      %p152 = por %p150, %p151
      %p153 = scmp.ne.s32.totalorder %s139, %s140
      %p154 = scmp.eq.s32.totalorder %s22, 1
      %p155 = por %p153, %p154
      %p157 = scmp.ne.s32.totalorder %s140, %s156
      %p158 = scmp.eq.s32.totalorder %s22, 0
      %p159 = por %p157, %p158
      %p160 = scmp.le.s32.totalorder 1, %s16
      %p161 = scmp.lt.s32.totalorder %s16, 3
      %p162 = pnand %p160, %p161
      %p163 = pneg %p162
      // Predicated region
      $region9: #{tpu_custom_call.1} parent=5 // pred_check
        _
      $region10: #{tpu_custom_call.1} parent=5 // pred_check_branch
        %165 = sbr.rel (%p162) target = $region12
      $region11: #{tpu_custom_call.1} parent=5 // pred_region
        %s166 = ssub.s32 %s16, 1
        // Predicated region
        $region13: #{tpu_custom_call.1} parent=11 // pred_check
          %p167 = pneg %p37
        $region14: #{tpu_custom_call.1} parent=11 // pred_check_branch
          %169 = sbr.rel (%p167) target = $region16
        $region15: #{tpu_custom_call.1} parent=11 // pred_region
          %s171 = ssub.s32 256, 256
          %172 = vsyncadd [#allocation5], %s171
          %s173 = sshll.u32 [#allocation4], 4
          %s174 = int_to_ptr.vmem [resolvable:$true] %s173
          %179 = dma.hbm_to_vmem [thread:$0]  %s0, 256, %s174, [#allocation5], 128, 128, 8
        $region16: #{tpu_custom_call.1} parent=11 // pred_fallthru
          _
        // Predicated region
        $region17: #{tpu_custom_call.1} parent=11 // pred_check
          %p180 = pneg %p58
        $region18: #{tpu_custom_call.1} parent=11 // pred_check_branch
          %182 = sbr.rel (%p180) target = $region20
        $region19: #{tpu_custom_call.1} parent=11 // pred_region
          %s184 = ssub.s32 256, 256
          %185 = vsyncadd [#allocation8], %s184
          %s186 = sshll.u32 [#allocation7], 4
          %s187 = int_to_ptr.vmem [resolvable:$true] %s186
          %192 = dma.hbm_to_vmem [thread:$0]  %s1, 256, %s187, [#allocation8], 128, 128, 8
        $region20: #{tpu_custom_call.1} parent=11 // pred_fallthru
          _
        // Predicated region
        $region21: #{tpu_custom_call.1} parent=11 // pred_check
          %p193 = pneg %p105
        $region22: #{tpu_custom_call.1} parent=11 // pred_check_branch
          %195 = sbr.rel (%p193) target = $region24
        $region23: #{tpu_custom_call.1} parent=11 // pred_region
          %s197 = ssub.s32 512, 512
          %198 = vsyncadd [#allocation8], %s197
          %s199 = sshll.u32 [#allocation10], 4
          %s200 = int_to_ptr.vmem [resolvable:$true] %s199
          %205 = dma.hbm_to_vmem [thread:$0]  %s3, 512, %s200, [#allocation8], 128, 128, 8
        $region24: #{tpu_custom_call.1} parent=11 // pred_fallthru
          _
        // Predicated region
        $region25: #{tpu_custom_call.1} parent=11 // pred_check
          %p206 = pneg %p126
        $region26: #{tpu_custom_call.1} parent=11 // pred_check_branch
          %208 = sbr.rel (%p206) target = $region28
        $region27: #{tpu_custom_call.1} parent=11 // pred_region
          _
        $region28: #{tpu_custom_call.1} parent=11 // pred_fallthru
          _
      $region12: #{tpu_custom_call.1} parent=5 // pred_fallthru
        _
      %p209 = scmp.lt.s32.totalorder %s16, 2
      // Predicated region
      $region29: #{tpu_custom_call.1} parent=5 // pred_check
        %p210 = pneg %p209
      $region30: #{tpu_custom_call.1} parent=5 // pred_check_branch
        %212 = sbr.rel (%p210) target = $region32
      $region31: #{tpu_custom_call.1} parent=5 // pred_region
        // Predicated region
        $region33: #{tpu_custom_call.1} parent=31 // pred_check
          %p213 = pneg %p78
        $region34: #{tpu_custom_call.1} parent=31 // pred_check_branch
          %215 = sbr.rel (%p213) target = $region36
        $region35: #{tpu_custom_call.1} parent=31 // pred_region
          %s216 = sand.u32 %s16, 1
          %s217 = scalar_lea.sflag [#allocation5], %s216
          %s218 = sand.u32 %s68, 1
          %s219 = smul.addr %s218, 16
          %s220 = scalar_lea.vmem [#allocation9], %s219
          %s222 = ssub.s32 256, 256
          %223 = vsyncadd %s217, %s222
          %s224 = smul.addr %s16, 2
          %s225 = smul.addr %s224, 128
          %s226 = scalar_lea.hbm %s2, %s225
          %s227 = sshll.u32 %s220, 4
          %s228 = int_to_ptr.vmem [resolvable:$true] %s227
          %233 = dma.hbm_to_vmem [thread:$0]  %s226, 256, %s228, %s217, 128, 128, 8
        $region36: #{tpu_custom_call.1} parent=31 // pred_fallthru
          _
      $region32: #{tpu_custom_call.1} parent=5 // pred_fallthru
        _
      %p234 = scmp.le.s32.totalorder 1, %s16
      %p235 = scmp.lt.s32.totalorder %s16, 3
      %p236 = pnand %p234, %p235
      %p237 = pneg %p236
      // Predicated region
      $region37: #{tpu_custom_call.1} parent=5 // pred_check
        _
      $region38: #{tpu_custom_call.1} parent=5 // pred_check_branch
        %239 = sbr.rel (%p236) target = $region40
      $region39: #{tpu_custom_call.1} parent=5 // pred_region
        %s240 = ssub.s32 %s16, 1
        // Predicated region
        $region41: #{tpu_custom_call.1} parent=39 // pred_check
          %p241 = pneg %p37
        $region42: #{tpu_custom_call.1} parent=39 // pred_check_branch
          %243 = sbr.rel (%p241) target = $region44
        $region43: #{tpu_custom_call.1} parent=39 // pred_region
          %244 = dma.done [#allocation5], 256
        $region44: #{tpu_custom_call.1} parent=39 // pred_fallthru
          _
        // Predicated region
        $region45: #{tpu_custom_call.1} parent=39 // pred_check
          %p245 = pneg %p58
        $region46: #{tpu_custom_call.1} parent=39 // pred_check_branch
          %247 = sbr.rel (%p245) target = $region48
        $region47: #{tpu_custom_call.1} parent=39 // pred_region
          %248 = dma.done [#allocation8], 256
        $region48: #{tpu_custom_call.1} parent=39 // pred_fallthru
          _
        %s249 = sand.u32 %s21, 1
        %s250 = scalar_lea.sflag [#allocation5], %s249
        %s251 = sand.u32 %s71, 1
        %s252 = smul.addr %s251, 16
        %s253 = scalar_lea.vmem [#allocation9], %s252
        // Predicated region
        $region49: #{tpu_custom_call.1} parent=39 // pred_check
          %p254 = pneg %p84
        $region50: #{tpu_custom_call.1} parent=39 // pred_check_branch
          %256 = sbr.rel (%p254) target = $region52
        $region51: #{tpu_custom_call.1} parent=39 // pred_region
          %257 = dma.done %s250, 256
        $region52: #{tpu_custom_call.1} parent=39 // pred_fallthru
          _
        // Predicated region
        $region53: #{tpu_custom_call.1} parent=39 // pred_check
          %p258 = pneg %p105
        $region54: #{tpu_custom_call.1} parent=39 // pred_check_branch
          %260 = sbr.rel (%p258) target = $region56
        $region55: #{tpu_custom_call.1} parent=39 // pred_region
          %261 = dma.done [#allocation8], 512
        $region56: #{tpu_custom_call.1} parent=39 // pred_fallthru
          _
        %p262 = pneg %p37
        %p263 = pneg %p34
        %p264 = pneg %p58
        %p265 = pneg %p55
        %s266 = sand.u32 %s21, 1
        %s267 = scalar_lea.sflag [#allocation5], %s266
        %s268 = sand.u32 %s71, 1
        %s269 = smul.addr %s268, 16
        %s270 = scalar_lea.vmem [#allocation9], %s269
        %p271 = pneg %p84
        %p272 = pneg %p81
        %p273 = pneg %p105
        %p274 = pneg %p102
        %p275 = pneg %p126
        %p276 = pneg %p123
        %p277 = pneg %p152
        %p278 = pneg %p149
        %s279 = sand.u32 %s139, 1
        %s280 = scalar_lea.sflag [#allocation6], %s279
        %s281 = sand.u32 %s139, 1
        %s282 = smul.addr %s281, 16
        %s283 = scalar_lea.vmem [#allocation11], %s282
        %p284 = scmp.eq.s32.totalorder %s21, 0
        // Predicated region
        $region57: #{tpu_custom_call.1} parent=39 // pred_check
          %p285 = pneg %p284
        $region58: #{tpu_custom_call.1} parent=39 // pred_check_branch
          %287 = sbr.rel (%p285) target = $region60
        $region59: #{tpu_custom_call.1} parent=39 // pred_region
          %v288 = vld [vmem:[#allocation4] sm:$0xff]
          %v289 = vld [vmem:[#allocation4 + $0x8] sm:$0xff]
          %v290 = vld [vmem:[#allocation7] sm:$0xff]
          %v291 = vld [vmem:[#allocation7 + $0x8] sm:$0xff]
          %v292 = vmul.f32 %v288, %v290
          %v293 = vmul.f32 %v289, %v291
          %vm294 = vcmask 130048
          %295 = vst.msk [vmem:[#allocation2] sm:$0xff] %vm294, %v292
          %296 = vst.msk [vmem:[#allocation2 + $0x8] sm:$0xff] %vm294, %v293
          %v297 = vsel %vm294, %v292, 0.0
          %298 = vadd.xlane.f32.xlu0 %v297
          %v299 = vpop.xlane.xlu0 %298
          %v300 = vsel %vm294, %v293, 0.0
          %301 = vadd.xlane.f32.xlu0 %v300
          %v302 = vpop.xlane.xlu0 %301
          %vm303 = vcmp.eq.f32.partialorder %v299, 0.0
          %vm304 = vcmp.eq.f32.partialorder %v302, 0.0
          %v305 = vrcp.pop %v299
          %v306 = vmul.f32 1.0, %v305
          %v307 = vrcp.pop %v302
          %v308 = vmul.f32 1.0, %v307
          %v309 = vsel %vm303, 0.0, %v306
          %v310 = vsel %vm304, 0.0, %v308
          %vm311 = vcmask 7168
          %312 = vst.msk [vmem:[#allocation3] sm:$0xff] %vm311, %v309
          %313 = vst.msk [vmem:[#allocation3 + $0x8] sm:$0xff] %vm311, %v310
        $region60: #{tpu_custom_call.1} parent=39 // pred_fallthru
          _
        %v314 = vld [vmem:[#allocation3] sm:$0xff]
        %v315 = vld [vmem:[#allocation3 + $0x8] sm:$0xff]
        %v316 = vld [vmem:[#allocation2] sm:$0xff]
        %v317 = vld [vmem:[#allocation2 + $0x8] sm:$0xff]
        %v318 = vld [vmem:[%s253] sm:$0xff]
        %v319 = vld [vmem:[%s253 + $0x8] sm:$0xff]
        %vm320 = vcmask 130048
        %v322 = vsel %vm320, %v316, 0
        %v325 = vsel %vm320, %v317, 0
        %327 = vmatprep.subr.mxu0 0.0
        %328 = vmatpush1.msra.mxu0 %v318
        %329 = vmatprep.subr.mxu0 0.0
        %330 = vmatpush1.msra.mxu0 %v319
        %331 = vmatprep.subr.mxu0 0.0
        %332 = vmatpush1.msra.mxu0 0.0
        %333 = vmatprep.subr.mxu0 0.0
        %334 = vmatpush1.msra.mxu0 0.0
        %335 = vmatprep.subr.mxu0 0.0
        %336 = vmatpush1.msra.mxu0 0.0
        %337 = vmatprep.subr.mxu0 0.0
        %338 = vmatpush1.msra.mxu0 0.0
        %339 = vmatprep.subr.mxu0 0.0
        %340 = vmatpush1.msra.mxu0 0.0
        %341 = vmatprep.subr.mxu0 0.0
        %342 = vmatpush1.msra.mxu0 0.0
        %343 = vmatprep.subr.mxu0 0.0
        %344 = vmatpush1.msra.mxu0 0.0
        %345 = vmatprep.subr.mxu0 0.0
        %346 = vmatpush1.msra.mxu0 0.0
        %347 = vmatprep.subr.mxu0 0.0
        %348 = vmatpush1.msra.mxu0 0.0
        %349 = vmatprep.subr.mxu0 0.0
        %350 = vmatpush1.msra.mxu0 0.0
        %351 = vmatprep.subr.mxu0 0.0
        %352 = vmatpush1.msra.mxu0 0.0
        %353 = vmatprep.subr.mxu0 0.0
        %354 = vmatpush1.msra.mxu0 0.0
        %355 = vmatprep.subr.mxu0 0.0
        %356 = vmatpush1.msra.mxu0 0.0
        %357 = vmatprep.subr.mxu0 0.0
        %358 = vmatpush1.msra.mxu0 0.0
        %359 = vmatprep.subr.mxu0 0.0
        %360 = vmatpush1.msra.mxu0 0.0
        %361 = vmatprep.subr.mxu0 0.0
        %362 = vmatpush1.msra.mxu0 0.0
        %363 = vmatprep.subr.mxu0 0.0
        %364 = vmatpush1.msra.mxu0 0.0
        %365 = vmatprep.subr.mxu0 0.0
        %366 = vmatpush1.msra.mxu0 0.0
        %367 = vmatprep.subr.mxu0 0.0
        %368 = vmatpush1.msra.mxu0 0.0
        %369 = vmatprep.subr.mxu0 0.0
        %370 = vmatpush1.msra.mxu0 0.0
        %371 = vmatprep.subr.mxu0 0.0
        %372 = vmatpush1.msra.mxu0 0.0
        %373 = vmatprep.subr.mxu0 0.0
        %374 = vmatpush1.msra.mxu0 0.0
        %375 = vmatprep.subr.mxu0 0.0
        %376 = vmatpush1.msra.mxu0 0.0
        %377 = vmatprep.subr.mxu0 0.0
        %378 = vmatpush1.msra.mxu0 0.0
        %379 = vmatprep.subr.mxu0 0.0
        %380 = vmatpush1.msra.mxu0 0.0
        %381 = vmatprep.subr.mxu0 0.0
        %382 = vmatpush1.msra.mxu0 0.0
        %383 = vmatprep.subr.mxu0 0.0
        %384 = vmatpush1.msra.mxu0 0.0
        %385 = vmatprep.subr.mxu0 0.0
        %386 = vmatpush1.msra.mxu0 0.0
        %387 = vmatprep.subr.mxu0 0.0
        %388 = vmatpush1.msra.mxu0 0.0
        %389 = vmatprep.subr.mxu0 0.0
        %390 = vmatpush1.msra.mxu0 0.0
        %391 = vmatprep.mubr.f32.mxu0 0.0
        %392 = vmatmul.mubr.f32.gmra.mrb[0].mxu0 %v322
        %v393 = vpop.f32.mrb[0].mxu0
        %v394 = vadd.f32 0.0, %v393
        %v395 = vpop.f32.mrb[0].mxu0
        %396 = vmatprep.mubr.f32.mxu0 0.0
        %397 = vmatmul.mubr.f32.gmra.mrb[0].mxu0 %v325
        %v398 = vpop.f32.mrb[0].mxu0
        %v399 = vadd.f32 0.0, %v398
        %v400 = vpop.f32.mrb[0].mxu0
        %401 = vdwg.mxu0
        %403 = vset.pattern.permute.xlu0 0
        %404 = vperm.xlu0 %403, %v314
        %v405 = vpop.permute.xlu0 %404
        %408 = vset.pattern.permute.xlu0 0
        %409 = vperm.xlu0 %408, %v315
        %v410 = vpop.permute.xlu0 %409
        %v412 = vmul.f32 %v405, %v394
        %v413 = vmul.f32 %v410, %v399
        %v414 = vld [vmem:[#allocation10] sm:$0xff]
        %v415 = vld [vmem:[#allocation10 + $0x8] sm:$0xff]
        %v416 = vld [vmem:[#allocation10 + $0x10] sm:$0xff]
        %v417 = vld [vmem:[#allocation10 + $0x18] sm:$0xff]
        %v418 = vld [vmem:[%s4] sm:$0x1]
        %v420 = vlaneseq
        %v421 = vshrl.u32 %v420, 7
        %v422 = vsub.s32 0, %v421
        %v423 = vrot.slane %v418, %v422
        %vm425 = vcmask 261120
        %v427 = vsel %vm425, %v412, 0
        %v430 = vsel %vm425, %v413, 0
        %432 = vmatprep.subr.mxu0 0.0
        %433 = vmatpush1.msra.mxu0 %v414
        %434 = vmatprep.subr.mxu0 0.0
        %435 = vmatpush1.msra.mxu0 %v415
        %436 = vmatprep.subr.mxu0 0.0
        %437 = vmatpush1.msra.mxu0 %v416
        %438 = vmatprep.subr.mxu0 0.0
        %439 = vmatpush1.msra.mxu0 %v417
        %440 = vmatprep.subr.mxu0 0.0
        %441 = vmatpush1.msra.mxu0 0.0
        %442 = vmatprep.subr.mxu0 0.0
        %443 = vmatpush1.msra.mxu0 0.0
        %444 = vmatprep.subr.mxu0 0.0
        %445 = vmatpush1.msra.mxu0 0.0
        %446 = vmatprep.subr.mxu0 0.0
        %447 = vmatpush1.msra.mxu0 0.0
        %448 = vmatprep.subr.mxu0 0.0
        %449 = vmatpush1.msra.mxu0 0.0
        %450 = vmatprep.subr.mxu0 0.0
        %451 = vmatpush1.msra.mxu0 0.0
        %452 = vmatprep.subr.mxu0 0.0
        %453 = vmatpush1.msra.mxu0 0.0
        %454 = vmatprep.subr.mxu0 0.0
        %455 = vmatpush1.msra.mxu0 0.0
        %456 = vmatprep.subr.mxu0 0.0
        %457 = vmatpush1.msra.mxu0 0.0
        %458 = vmatprep.subr.mxu0 0.0
        %459 = vmatpush1.msra.mxu0 0.0
        %460 = vmatprep.subr.mxu0 0.0
        %461 = vmatpush1.msra.mxu0 0.0
        %462 = vmatprep.subr.mxu0 0.0
        %463 = vmatpush1.msra.mxu0 0.0
        %464 = vmatprep.subr.mxu0 0.0
        %465 = vmatpush1.msra.mxu0 0.0
        %466 = vmatprep.subr.mxu0 0.0
        %467 = vmatpush1.msra.mxu0 0.0
        %468 = vmatprep.subr.mxu0 0.0
        %469 = vmatpush1.msra.mxu0 0.0
        %470 = vmatprep.subr.mxu0 0.0
        %471 = vmatpush1.msra.mxu0 0.0
        %472 = vmatprep.subr.mxu0 0.0
        %473 = vmatpush1.msra.mxu0 0.0
        %474 = vmatprep.subr.mxu0 0.0
        %475 = vmatpush1.msra.mxu0 0.0
        %476 = vmatprep.subr.mxu0 0.0
        %477 = vmatpush1.msra.mxu0 0.0
        %478 = vmatprep.subr.mxu0 0.0
        %479 = vmatpush1.msra.mxu0 0.0
        %480 = vmatprep.subr.mxu0 0.0
        %481 = vmatpush1.msra.mxu0 0.0
        %482 = vmatprep.subr.mxu0 0.0
        %483 = vmatpush1.msra.mxu0 0.0
        %484 = vmatprep.subr.mxu0 0.0
        %485 = vmatpush1.msra.mxu0 0.0
        %486 = vmatprep.subr.mxu0 0.0
        %487 = vmatpush1.msra.mxu0 0.0
        %488 = vmatprep.subr.mxu0 0.0
        %489 = vmatpush1.msra.mxu0 0.0
        %490 = vmatprep.subr.mxu0 0.0
        %491 = vmatpush1.msra.mxu0 0.0
        %492 = vmatprep.subr.mxu0 0.0
        %493 = vmatpush1.msra.mxu0 0.0
        %494 = vmatprep.subr.mxu0 0.0
        %495 = vmatpush1.msra.mxu0 0.0
        %496 = vmatprep.mubr.f32.mxu0 0.0
        %497 = vmatmul.mubr.f32.gmra.mrb[0].mxu0 %v427
        %v498 = vpop.f32.mrb[0].mxu0
        %v499 = vadd.f32 %v423, %v498
        %v500 = vpop.f32.mrb[0].mxu0
        %501 = vmatprep.mubr.f32.mxu0 0.0
        %502 = vmatmul.mubr.f32.gmra.mrb[0].mxu0 %v430
        %v503 = vpop.f32.mrb[0].mxu0
        %v504 = vadd.f32 %v423, %v503
        %v505 = vpop.f32.mrb[0].mxu0
        %506 = vdwg.mxu0
        %v507 = vmax.f32 %v499, 0.0
        %v508 = vmax.f32 %v504, 0.0
        %509 = vst.msk [vmem:[%s283] sm:$0xff] %vm425, %v507
        %510 = vst.msk [vmem:[%s283 + $0x8] sm:$0xff] %vm425, %v508
        %s511 = sand.u32 %s139, 1
        %s512 = scalar_lea.sflag [#allocation6], %s511
        %s513 = sand.u32 %s139, 1
        %s514 = smul.addr %s513, 16
        %s515 = scalar_lea.vmem [#allocation11], %s514
        // Predicated region
        $region61: #{tpu_custom_call.1} parent=39 // pred_check
          %p516 = pneg %p149
        $region62: #{tpu_custom_call.1} parent=39 // pred_check_branch
          %518 = sbr.rel (%p516) target = $region64
        $region63: #{tpu_custom_call.1} parent=39 // pred_region
          %s520 = ssub.s32 256, 256
          %521 = vsyncadd %s512, %s520
          %s522 = smul.addr %s21, 2
          %s523 = smul.addr %s522, 128
          %s524 = scalar_lea.hbm %s5, %s523
          %s525 = sshll.u32 %s515, 4
          %s526 = int_to_ptr.vmem [resolvable:$true] %s525
          %531 = dma.vmem_to_hbm [thread:$0]  %s526, 256, %s524, %s512, 128, 128, 8
        $region64: #{tpu_custom_call.1} parent=39 // pred_fallthru
          _
      $region40: #{tpu_custom_call.1} parent=5 // pred_fallthru
        _
      %p532 = scmp.le.s32.totalorder 2, %s16
      // Predicated region
      $region65: #{tpu_custom_call.1} parent=5 // pred_check
        %p533 = pneg %p532
      $region66: #{tpu_custom_call.1} parent=5 // pred_check_branch
        %535 = sbr.rel (%p533) target = $region68
      $region67: #{tpu_custom_call.1} parent=5 // pred_region
        %s536 = ssub.s32 %s16, 2
        // Predicated region
        $region69: #{tpu_custom_call.1} parent=67 // pred_check
          %p537 = pneg %p155
        $region70: #{tpu_custom_call.1} parent=67 // pred_check_branch
          %539 = sbr.rel (%p537) target = $region72
        $region71: #{tpu_custom_call.1} parent=67 // pred_region
          %s540 = sand.u32 %s140, 1
          %s541 = scalar_lea.sflag [#allocation6], %s540
          %s542 = sand.u32 %s140, 1
          %s543 = smul.addr %s542, 16
          %s544 = scalar_lea.vmem [#allocation11], %s543
          %545 = dma.done %s541, 256
        $region72: #{tpu_custom_call.1} parent=67 // pred_fallthru
          _
      $region68: #{tpu_custom_call.1} parent=5 // pred_fallthru
        _
    $region6: #{tpu_custom_call.1} parent=1 // loop_footer
      %s20 = sadd.s32 1, %s16
    $region7: #{tpu_custom_call.1} parent=1 // loop_footer_branch
      %15 = sbr.rel target = $region3
    $region8: #{tpu_custom_call.1} parent=1 // loop_exit
      _
    %546 = vsyncpa [#allocation5], 1
    %s547 = scalar_lea.sflag [#allocation5], 1
    %548 = vsyncpa %s547, 1
    %549 = vsyncpa [#allocation8], 1
    %550 = vsyncpa [#allocation6], 1
    %s551 = scalar_lea.sflag [#allocation6], 1
    %552 = vsyncpa %s551, 1

</llo_original>
